<compile_context>
chip_gen: v7x
topology: tpu7x:2x2x1
jax: 0.10.0
libtpu: 0.0.40
codegen_flags: <defaults>
</compile_context>

<pallas_src>
import functools

import jax
import jax.numpy as jnp
from jax.experimental import pallas as pl
from jax.experimental.pallas import tpu as pltpu

KH = KW = 3  # conv taps


def _fused_kernel(p_ref, cw_ref, cb_ref, fcw_ref, fcb_ref, o_ref, *, b_blk, hw):
    """One grid step == one batch block of B_BLK images.

    p_ref   : (9*C, B_BLK*H*W)  im2col patches, lane dim = spatial (dense)
    cw_ref  : (OC, 9*C)         conv weights, single 2-D slab
    cb_ref  : (OC, 1)           conv bias
    fcw_ref : (OC, CLS_PAD)     FC weights, lane-padded to 128
    fcb_ref : (1, CLS_PAD)      FC bias, lane-padded
    o_ref   : (B_BLK, CLS_PAD)  per-block logits (lane-dense unmasked store)
    """
    # Conv as one K = 9*C contraction; f32 accumulation on the MXU.
    act = jnp.dot(cw_ref[...], p_ref[...],
                  preferred_element_type=jnp.float32)        # (OC, B_BLK*HW)
    act = jnp.maximum(act + cb_ref[...], 0.0)                 # bias + ReLU (f32 VPU, dense lanes)

    # Global average pool: one lane reduction per 128-aligned batch segment
    # (static slices; no mid-axis reshape/relayout).
    cols = [jnp.sum(act[:, b * hw:(b + 1) * hw], axis=1, keepdims=True)
            for b in range(b_blk)]
    pooled = jnp.concatenate(cols, axis=1) * (1.0 / hw)       # (OC, B_BLK)

    # Classifier head: contract over OC (transposed-lhs dot_general), then one
    # lane-dense (B_BLK, 128) store.
    logits = jax.lax.dot_general(
        pooled.astype(fcw_ref.dtype), fcw_ref[...],
        dimension_numbers=(((0,), (0,)), ((), ())),
        preferred_element_type=jnp.float32)                   # (B_BLK, CLS_PAD)
    o_ref[...] = logits + fcb_ref[...]


def wrapped_model_forward(x, conv_w, conv_b, fc_w, fc_b, *,
                          compute_dtype=jnp.float32, b_blk=8):
    """x: (N, C, H, W) float32 (NCHW, PyTorch convention). Returns (N, NUM_CLASSES).

    compute_dtype: dtype of the DMA'd patches / matmul operands (accumulation is
    always f32). Use jnp.bfloat16 on v6e/v7x for 2x DMA + full MXU rate.
    b_blk: batch rows per grid step (raise to 16-32 at production N; re-derive
    against v7x's 64 MiB VMEM -- vmem_limit_bytes below is computed from it).
    """
    N, C, H, W = x.shape
    OC = conv_w.shape[0]
    NUM_CLASSES = fc_w.shape[1]
    HW = H * W
    K9C = KH * KW * C

    N_PAD = ((N + b_blk - 1) // b_blk) * b_blk
    n_blocks = N_PAD // b_blk
    CLS_PAD = ((NUM_CLASSES + 127) // 128) * 128

    # ---- wrapper-side im2col (tiny: N*9*C*H*W elements) + lane-dense layout ----
    xpad = jnp.pad(x, ((0, 0), (0, 0), (1, 1), (1, 1)))              # (N, C, H+2, W+2)
    wins = [xpad[:, :, kh:kh + H, kw:kw + W]                          # each (N, C, H, W)
            for kh in range(KH) for kw in range(KW)]
    patches = jnp.stack(wins, axis=1).reshape(N, K9C, HW)             # row = tap*C + c
    patches = jnp.pad(patches, ((0, N_PAD - N), (0, 0), (0, 0)))
    patches = patches.transpose(1, 0, 2).reshape(K9C, N_PAD * HW)     # (9C, N_PAD*HW)
    patches = patches.astype(compute_dtype)

    # conv weight (OC, C, 3, 3) -> single 2-D (OC, 9C) slab, col = (kh*3+kw)*C + c
    cw = jnp.transpose(conv_w, (0, 2, 3, 1)).reshape(OC, K9C).astype(compute_dtype)
    cb = conv_b.reshape(OC, 1).astype(jnp.float32)
    fcw = jnp.zeros((OC, CLS_PAD), compute_dtype).at[:, :NUM_CLASSES].set(
        fc_w.astype(compute_dtype))
    fcb = jnp.zeros((1, CLS_PAD), jnp.float32).at[:, :NUM_CLASSES].set(fc_b)

    kernel = functools.partial(_fused_kernel, b_blk=b_blk, hw=HW)

    # VMEM budget from actual buffer sizes (double-buffered), capped for v7x (64 MiB).
    itemsize = jnp.dtype(compute_dtype).itemsize
    blk_in_bytes = K9C * b_blk * HW * itemsize
    blk_out_bytes = b_blk * CLS_PAD * 4
    const_bytes = (OC * K9C + OC) * itemsize + OC * CLS_PAD * itemsize + CLS_PAD * 4
    needed = 2 * (blk_in_bytes + blk_out_bytes + const_bytes)
    vmem_limit = int(min(max(4 * needed, 4 << 20), 64 << 20))

    cost = pl.CostEstimate(
        flops=2 * N_PAD * HW * K9C * OC + 2 * N_PAD * OC * CLS_PAD,
        transcendentals=0,
        bytes_accessed=int(patches.size * itemsize + (cw.size + fcw.size) * itemsize
                           + (cb.size + fcb.size) * 4 + N_PAD * CLS_PAD * 4),
    )

    out_pad = pl.pallas_call(
        kernel,
        out_shape=jax.ShapeDtypeStruct((N_PAD, CLS_PAD), jnp.float32),
        grid=(n_blocks,),
        in_specs=[
            pl.BlockSpec((K9C, b_blk * HW), lambda i: (0, i)),   # per-block patches
            pl.BlockSpec((OC, K9C), lambda i: (0, 0)),           # conv weight slab
            pl.BlockSpec((OC, 1), lambda i: (0, 0)),             # conv bias
            pl.BlockSpec((OC, CLS_PAD), lambda i: (0, 0)),       # FC weight
            pl.BlockSpec((1, CLS_PAD), lambda i: (0, 0)),        # FC bias
        ],
        out_specs=pl.BlockSpec((b_blk, CLS_PAD), lambda i: (i, 0)),
        compiler_params=pltpu.CompilerParams(
            # every block writes a disjoint batch-indexed output tile and nothing is
            # carried across steps -> safe to shard the batch axis across v7x cores.
            dimension_semantics=("parallel",),
            vmem_limit_bytes=vmem_limit,
        ),
        cost_estimate=cost,
    )(patches, cw, cb, fcw, fcb)

    return out_pad[:N, :NUM_CLASSES]


def _reference_forward(x, conv_w, conv_b, fc_w, fc_b):
    # pure-JAX reference (NCHW conv) for correctness check
    y = jax.lax.conv_general_dilated(
        x, conv_w, window_strides=(1, 1), padding=((1, 1), (1, 1)),
        dimension_numbers=("NCHW", "OIHW", "NCHW"),
    ) + conv_b[None, :, None, None]
    y = jnp.maximum(y, 0.0)
    pooled = jnp.mean(y, axis=(2, 3))  # (N, OC)
    return pooled @ fc_w + fc_b


if __name__ == "__main__":
    key = jax.random.PRNGKey(0)
    k1, k2, k3, k4, k5 = jax.random.split(key, 5)

    N, C, H, W = 2, 4, 16, 16
    OC, NUM_CLASSES = 8, 10

    x = jax.random.normal(k1, (N, C, H, W), dtype=jnp.float32)
    conv_w = jax.random.normal(k2, (OC, C, 3, 3), dtype=jnp.float32) * 0.1
    conv_b = jax.random.normal(k3, (OC,), dtype=jnp.float32) * 0.1
    fc_w = jax.random.normal(k4, (OC, NUM_CLASSES), dtype=jnp.float32) * 0.1
    fc_b = jax.random.normal(k5, (NUM_CLASSES,), dtype=jnp.float32) * 0.1

    ref = jax.block_until_ready(_reference_forward(x, conv_w, conv_b, fc_w, fc_b))

    # f32 operand path: strict check against the XLA reference.
    fwd_f32 = jax.jit(functools.partial(wrapped_model_forward, compute_dtype=jnp.float32))
    out = jax.block_until_ready(fwd_f32(x, conv_w, conv_b, fc_w, fc_b))
    assert out.shape == (N, NUM_CLASSES)
    assert jnp.allclose(out, ref, atol=1e-4, rtol=1e-4)

    # bf16 operand path (f32 accumulation): the production DMA/MXU configuration on
    # v6e/v7x; tolerance reflects bf16 operand rounding only.
    fwd_bf16 = jax.jit(functools.partial(wrapped_model_forward, compute_dtype=jnp.bfloat16))
    out_bf16 = jax.block_until_ready(fwd_bf16(x, conv_w, conv_b, fc_w, fc_b))
    assert out_bf16.shape == (N, NUM_CLASSES)
    assert jnp.allclose(out_bf16, ref, atol=2e-2, rtol=2e-2)

    print("KERNEL_OK")
</pallas_src>

<mosaic_0001>
module attributes {stable_mosaic.version = 11 : i64} {
  func.func @_fused_kernel(%arg0: i32, %arg1: memref<36x2048xf32, #tpu.memory_space<vmem>>, %arg2: memref<8x36xf32, #tpu.memory_space<vmem>>, %arg3: memref<8x1xf32, #tpu.memory_space<vmem>>, %arg4: memref<8x128xf32, #tpu.memory_space<vmem>>, %arg5: memref<1x128xf32, #tpu.memory_space<vmem>>, %arg6: memref<8x128xf32, #tpu.memory_space<vmem>>) attributes {dimension_semantics = [#tpu.dimension_semantics<parallel>], iteration_bounds = array<i64: 1>, scalar_prefetch = 0 : i64, scratch_operands = 0 : i64, tpu.core_type = #tpu.core_type<tc>, window_params = [{transform_indices = @transform_0, window_bounds = array<i64: 36, 2048>}, {pipeline_mode = #tpu.pipeline_mode<synchronous>, transform_indices = @transform_1, window_bounds = array<i64: 8, 36>}, {pipeline_mode = #tpu.pipeline_mode<synchronous>, transform_indices = @transform_2, window_bounds = array<i64: 8, 1>}, {pipeline_mode = #tpu.pipeline_mode<synchronous>, transform_indices = @transform_3, window_bounds = array<i64: 8, 128>}, {pipeline_mode = #tpu.pipeline_mode<synchronous>, transform_indices = @transform_4, window_bounds = array<i64: 1, 128>}, {transform_indices = @transform_5, window_bounds = array<i64: 8, 128>}]} {
    %c0 = arith.constant 0 : index
    %c0_0 = arith.constant 0 : index
    %0 = vector.load %arg2[%c0, %c0_0] : memref<8x36xf32, #tpu.memory_space<vmem>>, vector<8x36xf32>
    %c0_1 = arith.constant 0 : index
    %c0_2 = arith.constant 0 : index
    %1 = vector.load %arg1[%c0_1, %c0_2] : memref<36x2048xf32, #tpu.memory_space<vmem>>, vector<36x2048xf32>
    %cst = arith.constant dense<0.000000e+00> : vector<8x2048xf32>
    %2 = tpu.matmul %0, %1, %cst {dimension_numbers = #tpu.dot_dimension_numbers<[1], [0], [0], [1], [0, 0, 1, 1], [], []>} : vector<8x36xf32>, vector<36x2048xf32>, vector<8x2048xf32> -> vector<8x2048xf32>
    %c0_3 = arith.constant 0 : index
    %c0_4 = arith.constant 0 : index
    %3 = vector.load %arg3[%c0_3, %c0_4] : memref<8x1xf32, #tpu.memory_space<vmem>>, vector<8x1xf32>
    %4 = vector.broadcast %3 : vector<8x1xf32> to vector<8x2048xf32>
    %5 = arith.addf %2, %4 : vector<8x2048xf32>
    %cst_5 = arith.constant 0.000000e+00 : f32
    %6 = vector.broadcast %cst_5 : f32 to vector<8x2048xf32>
    %7 = arith.maximumf %5, %6 : vector<8x2048xf32>
    %8 = vector.extract_strided_slice %7 {offsets = [0, 0], sizes = [8, 256], strides = [1, 1]} : vector<8x2048xf32> to vector<8x256xf32>
    %cst_6 = arith.constant dense<0.000000e+00> : vector<8xf32>
    %9 = vector.multi_reduction <add>, %8, %cst_6 [1] : vector<8x256xf32> to vector<8xf32>
    %10 = vector.shape_cast %9 : vector<8xf32> to vector<8x1xf32>
    %11 = vector.extract_strided_slice %7 {offsets = [0, 256], sizes = [8, 256], strides = [1, 1]} : vector<8x2048xf32> to vector<8x256xf32>
    %cst_7 = arith.constant dense<0.000000e+00> : vector<8xf32>
    %12 = vector.multi_reduction <add>, %11, %cst_7 [1] : vector<8x256xf32> to vector<8xf32>
    %13 = vector.shape_cast %12 : vector<8xf32> to vector<8x1xf32>
    %14 = vector.extract_strided_slice %7 {offsets = [0, 512], sizes = [8, 256], strides = [1, 1]} : vector<8x2048xf32> to vector<8x256xf32>
    %cst_8 = arith.constant dense<0.000000e+00> : vector<8xf32>
    %15 = vector.multi_reduction <add>, %14, %cst_8 [1] : vector<8x256xf32> to vector<8xf32>
    %16 = vector.shape_cast %15 : vector<8xf32> to vector<8x1xf32>
    %17 = vector.extract_strided_slice %7 {offsets = [0, 768], sizes = [8, 256], strides = [1, 1]} : vector<8x2048xf32> to vector<8x256xf32>
    %cst_9 = arith.constant dense<0.000000e+00> : vector<8xf32>
    %18 = vector.multi_reduction <add>, %17, %cst_9 [1] : vector<8x256xf32> to vector<8xf32>
    %19 = vector.shape_cast %18 : vector<8xf32> to vector<8x1xf32>
    %20 = vector.extract_strided_slice %7 {offsets = [0, 1024], sizes = [8, 256], strides = [1, 1]} : vector<8x2048xf32> to vector<8x256xf32>
    %cst_10 = arith.constant dense<0.000000e+00> : vector<8xf32>
    %21 = vector.multi_reduction <add>, %20, %cst_10 [1] : vector<8x256xf32> to vector<8xf32>
    %22 = vector.shape_cast %21 : vector<8xf32> to vector<8x1xf32>
    %23 = vector.extract_strided_slice %7 {offsets = [0, 1280], sizes = [8, 256], strides = [1, 1]} : vector<8x2048xf32> to vector<8x256xf32>
    %cst_11 = arith.constant dense<0.000000e+00> : vector<8xf32>
    %24 = vector.multi_reduction <add>, %23, %cst_11 [1] : vector<8x256xf32> to vector<8xf32>
    %25 = vector.shape_cast %24 : vector<8xf32> to vector<8x1xf32>
    %26 = vector.extract_strided_slice %7 {offsets = [0, 1536], sizes = [8, 256], strides = [1, 1]} : vector<8x2048xf32> to vector<8x256xf32>
    %cst_12 = arith.constant dense<0.000000e+00> : vector<8xf32>
    %27 = vector.multi_reduction <add>, %26, %cst_12 [1] : vector<8x256xf32> to vector<8xf32>
    %28 = vector.shape_cast %27 : vector<8xf32> to vector<8x1xf32>
    %29 = vector.extract_strided_slice %7 {offsets = [0, 1792], sizes = [8, 256], strides = [1, 1]} : vector<8x2048xf32> to vector<8x256xf32>
    %cst_13 = arith.constant dense<0.000000e+00> : vector<8xf32>
    %30 = vector.multi_reduction <add>, %29, %cst_13 [1] : vector<8x256xf32> to vector<8xf32>
    %31 = vector.shape_cast %30 : vector<8xf32> to vector<8x1xf32>
    %32 = tpu.concatenate %10, %13, %16, %19, %22, %25, %28, %31 in 1 : vector<8x1xf32>, vector<8x1xf32>, vector<8x1xf32>, vector<8x1xf32>, vector<8x1xf32>, vector<8x1xf32>, vector<8x1xf32>, vector<8x1xf32> -> vector<8x8xf32>
    %cst_14 = arith.constant 3.906250e-03 : f32
    %33 = vector.broadcast %cst_14 : f32 to vector<8x8xf32>
    %34 = arith.mulf %32, %33 : vector<8x8xf32>
    %c0_15 = arith.constant 0 : index
    %c0_16 = arith.constant 0 : index
    %35 = vector.load %arg4[%c0_15, %c0_16] : memref<8x128xf32, #tpu.memory_space<vmem>>, vector<8x128xf32>
    %cst_17 = arith.constant dense<0.000000e+00> : vector<8x128xf32>
    %36 = tpu.matmul %34, %35, %cst_17 {dimension_numbers = #tpu.dot_dimension_numbers<[0], [0], [1], [1], [0, 1, 1, 1], [], []>} : vector<8x8xf32>, vector<8x128xf32>, vector<8x128xf32> -> vector<8x128xf32>
    %c0_18 = arith.constant 0 : index
    %c0_19 = arith.constant 0 : index
    %37 = vector.load %arg5[%c0_18, %c0_19] : memref<1x128xf32, #tpu.memory_space<vmem>>, vector<1x128xf32>
    %38 = vector.broadcast %37 : vector<1x128xf32> to vector<8x128xf32>
    %39 = arith.addf %36, %38 : vector<8x128xf32>
    %c0_20 = arith.constant 0 : index
    %c0_21 = arith.constant 0 : index
    %40 = vector.load %arg6[%c0_20, %c0_21] : memref<8x128xf32, #tpu.memory_space<vmem>>, vector<8x128xf32>
    tpu.vector_store %arg6[%c0_20, %c0_21], %39 {strides = array<i32>} : memref<8x128xf32, #tpu.memory_space<vmem>>, vector<8x128xf32>,
    return
  }
  func.func @transform_0(%arg0: i32) -> (i32, i32) {
    %c0_i32 = arith.constant 0 : i32
    %c0_i32_0 = arith.constant 0 : i32
    return %c0_i32, %arg0 : i32, i32
  }
  func.func @transform_1(%arg0: i32) -> (i32, i32) {
    %c0_i32 = arith.constant 0 : i32
    %c0_i32_0 = arith.constant 0 : i32
    %c0_i32_1 = arith.constant 0 : i32
    return %c0_i32, %c0_i32_0 : i32, i32
  }
  func.func @transform_2(%arg0: i32) -> (i32, i32) {
    %c0_i32 = arith.constant 0 : i32
    %c0_i32_0 = arith.constant 0 : i32
    %c0_i32_1 = arith.constant 0 : i32
    return %c0_i32, %c0_i32_0 : i32, i32
  }
  func.func @transform_3(%arg0: i32) -> (i32, i32) {
    %c0_i32 = arith.constant 0 : i32
    %c0_i32_0 = arith.constant 0 : i32
    %c0_i32_1 = arith.constant 0 : i32
    return %c0_i32, %c0_i32_0 : i32, i32
  }
  func.func @transform_4(%arg0: i32) -> (i32, i32) {
    %c0_i32 = arith.constant 0 : i32
    %c0_i32_0 = arith.constant 0 : i32
    %c0_i32_1 = arith.constant 0 : i32
    return %c0_i32, %c0_i32_0 : i32, i32
  }
  func.func @transform_5(%arg0: i32) -> (i32, i32) {
    %c0_i32 = arith.constant 0 : i32
    %c0_i32_0 = arith.constant 0 : i32
    return %arg0, %c0_i32 : i32, i32
  }
}

</mosaic_0001>

<llo_original>
// kernel: wrapped_model_forward.1
$region0: #{wrapped_model_forward.1}
  #allocation0 [shape = 'u32[]', space=smem, size = 0x4, offset = 0x4, fixed_abs, tag = 'smem constant byte address 0x4 - core index']
  #allocation1 [shape = 'u32[144,128]{1,0:T(1,128)}', space=vmem, size = 0x12000, scoped, tag = 'internal scratch']
  %s0 = inlined_call_operand.vmem [shape: f32[36,2048], index: 0, kind: input, shape index: {}]
  %s1 = inlined_call_operand.vmem [shape: f32[8,36], index: 1, kind: input, shape index: {}]
  %s2 = inlined_call_operand.vmem [shape: f32[8,1], index: 2, kind: input, shape index: {}]
  %s3 = inlined_call_operand.vmem [shape: f32[8,128], index: 3, kind: input, shape index: {}]
  %s4 = inlined_call_operand.vmem [shape: f32[1,128], index: 4, kind: input, shape index: {}]
  %s5 = inlined_call_operand.vmem [shape: f32[8,128], index: 5, kind: output, shape index: {}]
  %s6 = sld [smem:[#allocation0]]
  $region30: #{wrapped_model_forward.1} parent=0
    _
  %s8 = ssub.s32 1, %s6
  %s9 = scalar_select 0, %s8, %s6
  // Predicated region
  $region2: #{wrapped_model_forward.1} parent=0 // pred_check
    _
  $region3: #{wrapped_model_forward.1} parent=0 // pred_check_branch
    %11 = sbr.rel (0) target = $region5
  $region4: #{wrapped_model_forward.1} parent=0 // pred_region
    _
  $region5: #{wrapped_model_forward.1} parent=0 // pred_fallthru
    _
  // Predicated region
  $region6: #{wrapped_model_forward.1} parent=0 // pred_check
    _
  $region7: #{wrapped_model_forward.1} parent=0 // pred_check_branch
    %13 = sbr.rel (0) target = $region9
  $region8: #{wrapped_model_forward.1} parent=0 // pred_region
    _
  $region9: #{wrapped_model_forward.1} parent=0 // pred_fallthru
    _
  // Predicated region
  $region10: #{wrapped_model_forward.1} parent=0 // pred_check
    _
  $region11: #{wrapped_model_forward.1} parent=0 // pred_check_branch
    %15 = sbr.rel (0) target = $region13
  $region12: #{wrapped_model_forward.1} parent=0 // pred_region
    _
  $region13: #{wrapped_model_forward.1} parent=0 // pred_fallthru
    _
  // Predicated region
  $region14: #{wrapped_model_forward.1} parent=0 // pred_check
    _
  $region15: #{wrapped_model_forward.1} parent=0 // pred_check_branch
    %17 = sbr.rel (0) target = $region17
  $region16: #{wrapped_model_forward.1} parent=0 // pred_region
    _
  $region17: #{wrapped_model_forward.1} parent=0 // pred_fallthru
    _
  // Predicated region
  $region18: #{wrapped_model_forward.1} parent=0 // pred_check
    _
  $region19: #{wrapped_model_forward.1} parent=0 // pred_check_branch
    %19 = sbr.rel (0) target = $region21
  $region20: #{wrapped_model_forward.1} parent=0 // pred_region
    _
  $region21: #{wrapped_model_forward.1} parent=0 // pred_fallthru
    _
  %v20 = vld [vmem:[%s1] sm:$0xff]
  %v21 = vld [vmem:[%s0] sm:$0xff]
  %v22 = vld [vmem:[%s0 + $0x8] sm:$0xff]
  %v23 = vld [vmem:[%s0 + $0x10] sm:$0xff]
  %v24 = vld [vmem:[%s0 + $0x18] sm:$0xff]
  %v25 = vld [vmem:[%s0 + $0x20] sm:$0xff]
  %v26 = vld [vmem:[%s0 + $0x28] sm:$0xff]
  %v27 = vld [vmem:[%s0 + $0x30] sm:$0xff]
  %v28 = vld [vmem:[%s0 + $0x38] sm:$0xff]
  %v29 = vld [vmem:[%s0 + $0x40] sm:$0xff]
  %v30 = vld [vmem:[%s0 + $0x48] sm:$0xff]
  %v31 = vld [vmem:[%s0 + $0x50] sm:$0xff]
  %v32 = vld [vmem:[%s0 + $0x58] sm:$0xff]
  %v33 = vld [vmem:[%s0 + $0x60] sm:$0xff]
  %v34 = vld [vmem:[%s0 + $0x68] sm:$0xff]
  %v35 = vld [vmem:[%s0 + $0x70] sm:$0xff]
  %v36 = vld [vmem:[%s0 + $0x78] sm:$0xff]
  %v37 = vld [vmem:[%s0 + $0x80] sm:$0xff]
  %v38 = vld [vmem:[%s0 + $0x88] sm:$0xff]
  %v39 = vld [vmem:[%s0 + $0x90] sm:$0xff]
  %v40 = vld [vmem:[%s0 + $0x98] sm:$0xff]
  %v41 = vld [vmem:[%s0 + $0xa0] sm:$0xff]
  %v42 = vld [vmem:[%s0 + $0xa8] sm:$0xff]
  %v43 = vld [vmem:[%s0 + $0xb0] sm:$0xff]
  %v44 = vld [vmem:[%s0 + $0xb8] sm:$0xff]
  %v45 = vld [vmem:[%s0 + $0xc0] sm:$0xff]
  %v46 = vld [vmem:[%s0 + $0xc8] sm:$0xff]
  %v47 = vld [vmem:[%s0 + $0xd0] sm:$0xff]
  %v48 = vld [vmem:[%s0 + $0xd8] sm:$0xff]
  %v49 = vld [vmem:[%s0 + $0xe0] sm:$0xff]
  %v50 = vld [vmem:[%s0 + $0xe8] sm:$0xff]
  %v51 = vld [vmem:[%s0 + $0xf0] sm:$0xff]
  %v52 = vld [vmem:[%s0 + $0xf8] sm:$0xff]
  %v53 = vld [vmem:[%s0 + $0x100] sm:$0xff]
  %v54 = vld [vmem:[%s0 + $0x108] sm:$0xff]
  %v55 = vld [vmem:[%s0 + $0x110] sm:$0xff]
  %v56 = vld [vmem:[%s0 + $0x118] sm:$0xff]
  %v57 = vld [vmem:[%s0 + $0x120] sm:$0xff]
  %v58 = vld [vmem:[%s0 + $0x128] sm:$0xff]
  %v59 = vld [vmem:[%s0 + $0x130] sm:$0xff]
  %v60 = vld [vmem:[%s0 + $0x138] sm:$0xff]
  %v61 = vld [vmem:[%s0 + $0x140] sm:$0xff]
  %v62 = vld [vmem:[%s0 + $0x148] sm:$0xff]
  %v63 = vld [vmem:[%s0 + $0x150] sm:$0xff]
  %v64 = vld [vmem:[%s0 + $0x158] sm:$0xff]
  %v65 = vld [vmem:[%s0 + $0x160] sm:$0xff]
  %v66 = vld [vmem:[%s0 + $0x168] sm:$0xff]
  %v67 = vld [vmem:[%s0 + $0x170] sm:$0xff]
  %v68 = vld [vmem:[%s0 + $0x178] sm:$0xff]
  %v69 = vld [vmem:[%s0 + $0x180] sm:$0xff]
  %v70 = vld [vmem:[%s0 + $0x188] sm:$0xff]
  %v71 = vld [vmem:[%s0 + $0x190] sm:$0xff]
  %v72 = vld [vmem:[%s0 + $0x198] sm:$0xff]
  %v73 = vld [vmem:[%s0 + $0x1a0] sm:$0xff]
  %v74 = vld [vmem:[%s0 + $0x1a8] sm:$0xff]
  %v75 = vld [vmem:[%s0 + $0x1b0] sm:$0xff]
  %v76 = vld [vmem:[%s0 + $0x1b8] sm:$0xff]
  %v77 = vld [vmem:[%s0 + $0x1c0] sm:$0xff]
  %v78 = vld [vmem:[%s0 + $0x1c8] sm:$0xff]
  %v79 = vld [vmem:[%s0 + $0x1d0] sm:$0xff]
  %v80 = vld [vmem:[%s0 + $0x1d8] sm:$0xff]
  %v81 = vld [vmem:[%s0 + $0x1e0] sm:$0xff]
  %v82 = vld [vmem:[%s0 + $0x1e8] sm:$0xff]
  %v83 = vld [vmem:[%s0 + $0x1f0] sm:$0xff]
  %v84 = vld [vmem:[%s0 + $0x1f8] sm:$0xff]
  %v85 = vld [vmem:[%s0 + $0x200] sm:$0xf]
  %v86 = vld [vmem:[%s0 + $0x208] sm:$0xf]
  %v87 = vld [vmem:[%s0 + $0x210] sm:$0xf]
  %v88 = vld [vmem:[%s0 + $0x218] sm:$0xf]
  %v89 = vld [vmem:[%s0 + $0x220] sm:$0xf]
  %v90 = vld [vmem:[%s0 + $0x228] sm:$0xf]
  %v91 = vld [vmem:[%s0 + $0x230] sm:$0xf]
  %v92 = vld [vmem:[%s0 + $0x238] sm:$0xf]
  %v93 = vld [vmem:[%s0 + $0x240] sm:$0xf]
  %v94 = vld [vmem:[%s0 + $0x248] sm:$0xf]
  %v95 = vld [vmem:[%s0 + $0x250] sm:$0xf]
  %v96 = vld [vmem:[%s0 + $0x258] sm:$0xf]
  %v97 = vld [vmem:[%s0 + $0x260] sm:$0xf]
  %v98 = vld [vmem:[%s0 + $0x268] sm:$0xf]
  %v99 = vld [vmem:[%s0 + $0x270] sm:$0xf]
  %v100 = vld [vmem:[%s0 + $0x278] sm:$0xf]
  %v101 = vld [vmem:[%s2] sm:$0xff]
  %103 = vset.pattern.permute.xlu0 0
  %104 = vperm.xlu0 %103, %v101
  %v105 = vpop.permute.xlu0 %104
  %vm107 = vcmask 293888
  %v109 = vsel %vm107, %v20, 0
  %vm111 = vcmask 1043456
  %v113 = vsel %vm111, %v85, 0
  %v116 = vsel %vm111, %v86, 0
  %v119 = vsel %vm111, %v87, 0
  %v122 = vsel %vm111, %v88, 0
  %v125 = vsel %vm111, %v89, 0
  %v128 = vsel %vm111, %v90, 0
  %v131 = vsel %vm111, %v91, 0
  %v134 = vsel %vm111, %v92, 0
  %v137 = vsel %vm111, %v93, 0
  %v140 = vsel %vm111, %v94, 0
  %v143 = vsel %vm111, %v95, 0
  %v146 = vsel %vm111, %v96, 0
  %v149 = vsel %vm111, %v97, 0
  %v152 = vsel %vm111, %v98, 0
  %v155 = vsel %vm111, %v99, 0
  %v158 = vsel %vm111, %v100, 0
  %160 = vmatprep.subr.mxu0 %v22
  %161 = vmatpush1.msra.mxu0 %v21
  %162 = vmatprep.subr.mxu0 %v38
  %163 = vmatpush1.msra.mxu0 %v37
  %164 = vmatprep.subr.mxu0 %v54
  %165 = vmatpush1.msra.mxu0 %v53
  %166 = vmatprep.subr.mxu0 %v70
  %167 = vmatpush1.msra.mxu0 %v69
  %168 = vmatprep.subr.mxu0 %v116
  %169 = vmatpush1.msra.mxu0 %v113
  %170 = vmatprep.subr.mxu0 0.0
  %171 = vmatpush1.msra.mxu0 0.0
  %172 = vmatprep.subr.mxu0 0.0
  %173 = vmatpush1.msra.mxu0 0.0
  %174 = vmatprep.subr.mxu0 0.0
  %175 = vmatpush1.msra.mxu0 0.0
  %176 = vmatprep.subr.mxu0 0.0
  %177 = vmatpush1.msra.mxu0 0.0
  %178 = vmatprep.subr.mxu0 0.0
  %179 = vmatpush1.msra.mxu0 0.0
  %180 = vmatprep.subr.mxu0 0.0
  %181 = vmatpush1.msra.mxu0 0.0
  %182 = vmatprep.subr.mxu0 0.0
  %183 = vmatpush1.msra.mxu0 0.0
  %184 = vmatprep.subr.mxu0 0.0
  %185 = vmatpush1.msra.mxu0 0.0
  %186 = vmatprep.subr.mxu0 0.0
  %187 = vmatpush1.msra.mxu0 0.0
  %188 = vmatprep.subr.mxu0 0.0
  %189 = vmatpush1.msra.mxu0 0.0
  %190 = vmatprep.subr.mxu0 0.0
  %191 = vmatpush1.msra.mxu0 0.0
  %192 = vmatprep.subr.mxu0 0.0
  %193 = vmatpush1.msra.mxu0 0.0
  %194 = vmatprep.subr.mxu0 0.0
  %195 = vmatpush1.msra.mxu0 0.0
  %196 = vmatprep.subr.mxu0 0.0
  %197 = vmatpush1.msra.mxu0 0.0
  %198 = vmatprep.subr.mxu0 0.0
  %199 = vmatpush1.msra.mxu0 0.0
  %200 = vmatprep.subr.mxu0 0.0
  %201 = vmatpush1.msra.mxu0 0.0
  %202 = vmatprep.subr.mxu0 0.0
  %203 = vmatpush1.msra.mxu0 0.0
  %204 = vmatprep.subr.mxu0 0.0
  %205 = vmatpush1.msra.mxu0 0.0
  %206 = vmatprep.subr.mxu0 0.0
  %207 = vmatpush1.msra.mxu0 0.0
  %208 = vmatprep.subr.mxu0 0.0
  %209 = vmatpush1.msra.mxu0 0.0
  %210 = vmatprep.subr.mxu0 0.0
  %211 = vmatpush1.msra.mxu0 0.0
  %212 = vmatprep.subr.mxu0 0.0
  %213 = vmatpush1.msra.mxu0 0.0
  %214 = vmatprep.subr.mxu0 0.0
  %215 = vmatpush1.msra.mxu0 0.0
  %216 = vmatprep.subr.mxu0 0.0
  %217 = vmatpush1.msra.mxu0 0.0
  %218 = vmatprep.subr.mxu0 0.0
  %219 = vmatpush1.msra.mxu0 0.0
  %220 = vmatprep.subr.mxu0 0.0
  %221 = vmatpush1.msra.mxu0 0.0
  %222 = vmatprep.subr.mxu0 0.0
  %223 = vmatpush1.msra.mxu0 0.0
  %224 = vmatprep.mubr.f32.mxu0 0.0
  %225 = vmatmul.mubr.f32.gmra.mrb[0].mxu0 %v109
  %v226 = vpop.f32.mrb[0].mxu0
  %v227 = vadd.f32 %v105, %v226
  %v228 = vpop.f32.mrb[0].mxu0
  %v229 = vadd.f32 %v105, %v228
  %230 = vdwg.mxu0
  %231 = vmatprep.subr.mxu0 %v24
  %232 = vmatpush1.msra.mxu0 %v23
  %233 = vmatprep.subr.mxu0 %v40
  %234 = vmatpush1.msra.mxu0 %v39
  %235 = vmatprep.subr.mxu0 %v56
  %236 = vmatpush1.msra.mxu0 %v55
  %237 = vmatprep.subr.mxu0 %v72
  %238 = vmatpush1.msra.mxu0 %v71
  %239 = vmatprep.subr.mxu0 %v122
  %240 = vmatpush1.msra.mxu0 %v119
  %241 = vmatprep.subr.mxu0 0.0
  %242 = vmatpush1.msra.mxu0 0.0
  %243 = vmatprep.subr.mxu0 0.0
  %244 = vmatpush1.msra.mxu0 0.0
  %245 = vmatprep.subr.mxu0 0.0
  %246 = vmatpush1.msra.mxu0 0.0
  %247 = vmatprep.subr.mxu0 0.0
  %248 = vmatpush1.msra.mxu0 0.0
  %249 = vmatprep.subr.mxu0 0.0
  %250 = vmatpush1.msra.mxu0 0.0
  %251 = vmatprep.subr.mxu0 0.0
  %252 = vmatpush1.msra.mxu0 0.0
  %253 = vmatprep.subr.mxu0 0.0
  %254 = vmatpush1.msra.mxu0 0.0
  %255 = vmatprep.subr.mxu0 0.0
  %256 = vmatpush1.msra.mxu0 0.0
  %257 = vmatprep.subr.mxu0 0.0
  %258 = vmatpush1.msra.mxu0 0.0
  %259 = vmatprep.subr.mxu0 0.0
  %260 = vmatpush1.msra.mxu0 0.0
  %261 = vmatprep.subr.mxu0 0.0
  %262 = vmatpush1.msra.mxu0 0.0
  %263 = vmatprep.subr.mxu0 0.0
  %264 = vmatpush1.msra.mxu0 0.0
  %265 = vmatprep.subr.mxu0 0.0
  %266 = vmatpush1.msra.mxu0 0.0
  %267 = vmatprep.subr.mxu0 0.0
  %268 = vmatpush1.msra.mxu0 0.0
  %269 = vmatprep.subr.mxu0 0.0
  %270 = vmatpush1.msra.mxu0 0.0
  %271 = vmatprep.subr.mxu0 0.0
  %272 = vmatpush1.msra.mxu0 0.0
  %273 = vmatprep.subr.mxu0 0.0
  %274 = vmatpush1.msra.mxu0 0.0
  %275 = vmatprep.subr.mxu0 0.0
  %276 = vmatpush1.msra.mxu0 0.0
  %277 = vmatprep.subr.mxu0 0.0
  %278 = vmatpush1.msra.mxu0 0.0
  %279 = vmatprep.subr.mxu0 0.0
  %280 = vmatpush1.msra.mxu0 0.0
  %281 = vmatprep.subr.mxu0 0.0
  %282 = vmatpush1.msra.mxu0 0.0
  %283 = vmatprep.subr.mxu0 0.0
  %284 = vmatpush1.msra.mxu0 0.0
  %285 = vmatprep.subr.mxu0 0.0
  %286 = vmatpush1.msra.mxu0 0.0
  %287 = vmatprep.subr.mxu0 0.0
  %288 = vmatpush1.msra.mxu0 0.0
  %289 = vmatprep.subr.mxu0 0.0
  %290 = vmatpush1.msra.mxu0 0.0
  %291 = vmatprep.subr.mxu0 0.0
  %292 = vmatpush1.msra.mxu0 0.0
  %293 = vmatprep.subr.mxu0 0.0
  %294 = vmatpush1.msra.mxu0 0.0
  %295 = vmatprep.mubr.f32.mxu0 0.0
  %296 = vmatmul.mubr.f32.gmra.mrb[0].mxu0 %v109
  %v297 = vpop.f32.mrb[0].mxu0
  %v298 = vadd.f32 %v105, %v297
  %v299 = vpop.f32.mrb[0].mxu0
  %v300 = vadd.f32 %v105, %v299
  %301 = vdwg.mxu0
  %302 = vmatprep.subr.mxu0 %v26
  %303 = vmatpush1.msra.mxu0 %v25
  %304 = vmatprep.subr.mxu0 %v42
  %305 = vmatpush1.msra.mxu0 %v41
  %306 = vmatprep.subr.mxu0 %v58
  %307 = vmatpush1.msra.mxu0 %v57
  %308 = vmatprep.subr.mxu0 %v74
  %309 = vmatpush1.msra.mxu0 %v73
  %310 = vmatprep.subr.mxu0 %v128
  %311 = vmatpush1.msra.mxu0 %v125
  %312 = vmatprep.subr.mxu0 0.0
  %313 = vmatpush1.msra.mxu0 0.0
  %314 = vmatprep.subr.mxu0 0.0
  %315 = vmatpush1.msra.mxu0 0.0
  %316 = vmatprep.subr.mxu0 0.0
  %317 = vmatpush1.msra.mxu0 0.0
  %318 = vmatprep.subr.mxu0 0.0
  %319 = vmatpush1.msra.mxu0 0.0
  %320 = vmatprep.subr.mxu0 0.0
  %321 = vmatpush1.msra.mxu0 0.0
  %322 = vmatprep.subr.mxu0 0.0
  %323 = vmatpush1.msra.mxu0 0.0
  %324 = vmatprep.subr.mxu0 0.0
  %325 = vmatpush1.msra.mxu0 0.0
  %326 = vmatprep.subr.mxu0 0.0
  %327 = vmatpush1.msra.mxu0 0.0
  %328 = vmatprep.subr.mxu0 0.0
  %329 = vmatpush1.msra.mxu0 0.0
  %330 = vmatprep.subr.mxu0 0.0
  %331 = vmatpush1.msra.mxu0 0.0
  %332 = vmatprep.subr.mxu0 0.0
  %333 = vmatpush1.msra.mxu0 0.0
  %334 = vmatprep.subr.mxu0 0.0
  %335 = vmatpush1.msra.mxu0 0.0
  %336 = vmatprep.subr.mxu0 0.0
  %337 = vmatpush1.msra.mxu0 0.0
  %338 = vmatprep.subr.mxu0 0.0
  %339 = vmatpush1.msra.mxu0 0.0
  %340 = vmatprep.subr.mxu0 0.0
  %341 = vmatpush1.msra.mxu0 0.0
  %342 = vmatprep.subr.mxu0 0.0
  %343 = vmatpush1.msra.mxu0 0.0
  %344 = vmatprep.subr.mxu0 0.0
  %345 = vmatpush1.msra.mxu0 0.0
  %346 = vmatprep.subr.mxu0 0.0
  %347 = vmatpush1.msra.mxu0 0.0
  %348 = vmatprep.subr.mxu0 0.0
  %349 = vmatpush1.msra.mxu0 0.0
  %350 = vmatprep.subr.mxu0 0.0
  %351 = vmatpush1.msra.mxu0 0.0
  %352 = vmatprep.subr.mxu0 0.0
  %353 = vmatpush1.msra.mxu0 0.0
  %354 = vmatprep.subr.mxu0 0.0
  %355 = vmatpush1.msra.mxu0 0.0
  %356 = vmatprep.subr.mxu0 0.0
  %357 = vmatpush1.msra.mxu0 0.0
  %358 = vmatprep.subr.mxu0 0.0
  %359 = vmatpush1.msra.mxu0 0.0
  %360 = vmatprep.subr.mxu0 0.0
  %361 = vmatpush1.msra.mxu0 0.0
  %362 = vmatprep.subr.mxu0 0.0
  %363 = vmatpush1.msra.mxu0 0.0
  %364 = vmatprep.subr.mxu0 0.0
  %365 = vmatpush1.msra.mxu0 0.0
  %366 = vmatprep.mubr.f32.mxu0 0.0
  %367 = vmatmul.mubr.f32.gmra.mrb[0].mxu0 %v109
  %v368 = vpop.f32.mrb[0].mxu0
  %v369 = vadd.f32 %v105, %v368
  %v370 = vpop.f32.mrb[0].mxu0
  %v371 = vadd.f32 %v105, %v370
  %372 = vdwg.mxu0
  %373 = vmatprep.subr.mxu0 %v28
  %374 = vmatpush1.msra.mxu0 %v27
  %375 = vmatprep.subr.mxu0 %v44
  %376 = vmatpush1.msra.mxu0 %v43
  %377 = vmatprep.subr.mxu0 %v60
  %378 = vmatpush1.msra.mxu0 %v59
  %379 = vmatprep.subr.mxu0 %v76
  %380 = vmatpush1.msra.mxu0 %v75
  %381 = vmatprep.subr.mxu0 %v134
  %382 = vmatpush1.msra.mxu0 %v131
  %383 = vmatprep.subr.mxu0 0.0
  %384 = vmatpush1.msra.mxu0 0.0
  %385 = vmatprep.subr.mxu0 0.0
  %386 = vmatpush1.msra.mxu0 0.0
  %387 = vmatprep.subr.mxu0 0.0
  %388 = vmatpush1.msra.mxu0 0.0
  %389 = vmatprep.subr.mxu0 0.0
  %390 = vmatpush1.msra.mxu0 0.0
  %391 = vmatprep.subr.mxu0 0.0
  %392 = vmatpush1.msra.mxu0 0.0
  %393 = vmatprep.subr.mxu0 0.0
  %394 = vmatpush1.msra.mxu0 0.0
  %395 = vmatprep.subr.mxu0 0.0
  %396 = vmatpush1.msra.mxu0 0.0
  %397 = vmatprep.subr.mxu0 0.0
  %398 = vmatpush1.msra.mxu0 0.0
  %399 = vmatprep.subr.mxu0 0.0
  %400 = vmatpush1.msra.mxu0 0.0
  %401 = vmatprep.subr.mxu0 0.0
  %402 = vmatpush1.msra.mxu0 0.0
  %403 = vmatprep.subr.mxu0 0.0
  %404 = vmatpush1.msra.mxu0 0.0
  %405 = vmatprep.subr.mxu0 0.0
  %406 = vmatpush1.msra.mxu0 0.0
  %407 = vmatprep.subr.mxu0 0.0
  %408 = vmatpush1.msra.mxu0 0.0
  %409 = vmatprep.subr.mxu0 0.0
  %410 = vmatpush1.msra.mxu0 0.0
  %411 = vmatprep.subr.mxu0 0.0
  %412 = vmatpush1.msra.mxu0 0.0
  %413 = vmatprep.subr.mxu0 0.0
  %414 = vmatpush1.msra.mxu0 0.0
  %415 = vmatprep.subr.mxu0 0.0
  %416 = vmatpush1.msra.mxu0 0.0
  %417 = vmatprep.subr.mxu0 0.0
  %418 = vmatpush1.msra.mxu0 0.0
  %419 = vmatprep.subr.mxu0 0.0
  %420 = vmatpush1.msra.mxu0 0.0
  %421 = vmatprep.subr.mxu0 0.0
  %422 = vmatpush1.msra.mxu0 0.0
  %423 = vmatprep.subr.mxu0 0.0
  %424 = vmatpush1.msra.mxu0 0.0
  %425 = vmatprep.subr.mxu0 0.0
  %426 = vmatpush1.msra.mxu0 0.0
  %427 = vmatprep.subr.mxu0 0.0
  %428 = vmatpush1.msra.mxu0 0.0
  %429 = vmatprep.subr.mxu0 0.0
  %430 = vmatpush1.msra.mxu0 0.0
  %431 = vmatprep.subr.mxu0 0.0
  %432 = vmatpush1.msra.mxu0 0.0
  %433 = vmatprep.subr.mxu0 0.0
  %434 = vmatpush1.msra.mxu0 0.0
  %435 = vmatprep.subr.mxu0 0.0
  %436 = vmatpush1.msra.mxu0 0.0
  %437 = vmatprep.mubr.f32.mxu0 0.0
  %438 = vmatmul.mubr.f32.gmra.mrb[0].mxu0 %v109
  %v439 = vpop.f32.mrb[0].mxu0
  %v440 = vadd.f32 %v105, %v439
  %v441 = vpop.f32.mrb[0].mxu0
  %v442 = vadd.f32 %v105, %v441
  %443 = vdwg.mxu0
  %444 = vmatprep.subr.mxu0 %v30
  %445 = vmatpush1.msra.mxu0 %v29
  %446 = vmatprep.subr.mxu0 %v46
  %447 = vmatpush1.msra.mxu0 %v45
  %448 = vmatprep.subr.mxu0 %v62
  %449 = vmatpush1.msra.mxu0 %v61
  %450 = vmatprep.subr.mxu0 %v78
  %451 = vmatpush1.msra.mxu0 %v77
  %452 = vmatprep.subr.mxu0 %v140
  %453 = vmatpush1.msra.mxu0 %v137
  %454 = vmatprep.subr.mxu0 0.0
  %455 = vmatpush1.msra.mxu0 0.0
  %456 = vmatprep.subr.mxu0 0.0
  %457 = vmatpush1.msra.mxu0 0.0
  %458 = vmatprep.subr.mxu0 0.0
  %459 = vmatpush1.msra.mxu0 0.0
  %460 = vmatprep.subr.mxu0 0.0
  %461 = vmatpush1.msra.mxu0 0.0
  %462 = vmatprep.subr.mxu0 0.0
  %463 = vmatpush1.msra.mxu0 0.0
  %464 = vmatprep.subr.mxu0 0.0
  %465 = vmatpush1.msra.mxu0 0.0
  %466 = vmatprep.subr.mxu0 0.0
  %467 = vmatpush1.msra.mxu0 0.0
  %468 = vmatprep.subr.mxu0 0.0
  %469 = vmatpush1.msra.mxu0 0.0
  %470 = vmatprep.subr.mxu0 0.0
  %471 = vmatpush1.msra.mxu0 0.0
  %472 = vmatprep.subr.mxu0 0.0
  %473 = vmatpush1.msra.mxu0 0.0
  %474 = vmatprep.subr.mxu0 0.0
  %475 = vmatpush1.msra.mxu0 0.0
  %476 = vmatprep.subr.mxu0 0.0
  %477 = vmatpush1.msra.mxu0 0.0
  %478 = vmatprep.subr.mxu0 0.0
  %479 = vmatpush1.msra.mxu0 0.0
  %480 = vmatprep.subr.mxu0 0.0
  %481 = vmatpush1.msra.mxu0 0.0
  %482 = vmatprep.subr.mxu0 0.0
  %483 = vmatpush1.msra.mxu0 0.0
  %484 = vmatprep.subr.mxu0 0.0
  %485 = vmatpush1.msra.mxu0 0.0
  %486 = vmatprep.subr.mxu0 0.0
  %487 = vmatpush1.msra.mxu0 0.0
  %488 = vmatprep.subr.mxu0 0.0
  %489 = vmatpush1.msra.mxu0 0.0
  %490 = vmatprep.subr.mxu0 0.0
  %491 = vmatpush1.msra.mxu0 0.0
  %492 = vmatprep.subr.mxu0 0.0
  %493 = vmatpush1.msra.mxu0 0.0
  %494 = vmatprep.subr.mxu0 0.0
  %495 = vmatpush1.msra.mxu0 0.0
  %496 = vmatprep.subr.mxu0 0.0
  %497 = vmatpush1.msra.mxu0 0.0
  %498 = vmatprep.subr.mxu0 0.0
  %499 = vmatpush1.msra.mxu0 0.0
  %500 = vmatprep.subr.mxu0 0.0
  %501 = vmatpush1.msra.mxu0 0.0
  %502 = vmatprep.subr.mxu0 0.0
  %503 = vmatpush1.msra.mxu0 0.0
  %504 = vmatprep.subr.mxu0 0.0
  %505 = vmatpush1.msra.mxu0 0.0
  %506 = vmatprep.subr.mxu0 0.0
  %507 = vmatpush1.msra.mxu0 0.0
  %508 = vmatprep.mubr.f32.mxu0 0.0
  %509 = vmatmul.mubr.f32.gmra.mrb[0].mxu0 %v109
  %v510 = vpop.f32.mrb[0].mxu0
  %v511 = vadd.f32 %v105, %v510
  %v512 = vpop.f32.mrb[0].mxu0
  %v513 = vadd.f32 %v105, %v512
  %514 = vdwg.mxu0
  %515 = vmatprep.subr.mxu0 %v32
  %516 = vmatpush1.msra.mxu0 %v31
  %517 = vmatprep.subr.mxu0 %v48
  %518 = vmatpush1.msra.mxu0 %v47
  %519 = vmatprep.subr.mxu0 %v64
  %520 = vmatpush1.msra.mxu0 %v63
  %521 = vmatprep.subr.mxu0 %v80
  %522 = vmatpush1.msra.mxu0 %v79
  %523 = vmatprep.subr.mxu0 %v146
  %524 = vmatpush1.msra.mxu0 %v143
  %525 = vmatprep.subr.mxu0 0.0
  %526 = vmatpush1.msra.mxu0 0.0
  %527 = vmatprep.subr.mxu0 0.0
  %528 = vmatpush1.msra.mxu0 0.0
  %529 = vmatprep.subr.mxu0 0.0
  %530 = vmatpush1.msra.mxu0 0.0
  %531 = vmatprep.subr.mxu0 0.0
  %532 = vmatpush1.msra.mxu0 0.0
  %533 = vmatprep.subr.mxu0 0.0
  %534 = vmatpush1.msra.mxu0 0.0
  %535 = vmatprep.subr.mxu0 0.0
  %536 = vmatpush1.msra.mxu0 0.0
  %537 = vmatprep.subr.mxu0 0.0
  %538 = vmatpush1.msra.mxu0 0.0
  %539 = vmatprep.subr.mxu0 0.0
  %540 = vmatpush1.msra.mxu0 0.0
  %541 = vmatprep.subr.mxu0 0.0
  %542 = vmatpush1.msra.mxu0 0.0
  %543 = vmatprep.subr.mxu0 0.0
  %544 = vmatpush1.msra.mxu0 0.0
  %545 = vmatprep.subr.mxu0 0.0
  %546 = vmatpush1.msra.mxu0 0.0
  %547 = vmatprep.subr.mxu0 0.0
  %548 = vmatpush1.msra.mxu0 0.0
  %549 = vmatprep.subr.mxu0 0.0
  %550 = vmatpush1.msra.mxu0 0.0
  %551 = vmatprep.subr.mxu0 0.0
  %552 = vmatpush1.msra.mxu0 0.0
  %553 = vmatprep.subr.mxu0 0.0
  %554 = vmatpush1.msra.mxu0 0.0
  %555 = vmatprep.subr.mxu0 0.0
  %556 = vmatpush1.msra.mxu0 0.0
  %557 = vmatprep.subr.mxu0 0.0
  %558 = vmatpush1.msra.mxu0 0.0
  %559 = vmatprep.subr.mxu0 0.0
  %560 = vmatpush1.msra.mxu0 0.0
  %561 = vmatprep.subr.mxu0 0.0
  %562 = vmatpush1.msra.mxu0 0.0
  %563 = vmatprep.subr.mxu0 0.0
  %564 = vmatpush1.msra.mxu0 0.0
  %565 = vmatprep.subr.mxu0 0.0
  %566 = vmatpush1.msra.mxu0 0.0
  %567 = vmatprep.subr.mxu0 0.0
  %568 = vmatpush1.msra.mxu0 0.0
  %569 = vmatprep.subr.mxu0 0.0
  %570 = vmatpush1.msra.mxu0 0.0
  %571 = vmatprep.subr.mxu0 0.0
  %572 = vmatpush1.msra.mxu0 0.0
  %573 = vmatprep.subr.mxu0 0.0
  %574 = vmatpush1.msra.mxu0 0.0
  %575 = vmatprep.subr.mxu0 0.0
  %576 = vmatpush1.msra.mxu0 0.0
  %577 = vmatprep.subr.mxu0 0.0
  %578 = vmatpush1.msra.mxu0 0.0
  %579 = vmatprep.mubr.f32.mxu0 0.0
  %580 = vmatmul.mubr.f32.gmra.mrb[0].mxu0 %v109
  %v581 = vpop.f32.mrb[0].mxu0
  %v582 = vadd.f32 %v105, %v581
  %v583 = vpop.f32.mrb[0].mxu0
  %v584 = vadd.f32 %v105, %v583
  %585 = vdwg.mxu0
  %586 = vmatprep.subr.mxu0 %v34
  %587 = vmatpush1.msra.mxu0 %v33
  %588 = vmatprep.subr.mxu0 %v50
  %589 = vmatpush1.msra.mxu0 %v49
  %590 = vmatprep.subr.mxu0 %v66
  %591 = vmatpush1.msra.mxu0 %v65
  %592 = vmatprep.subr.mxu0 %v82
  %593 = vmatpush1.msra.mxu0 %v81
  %594 = vmatprep.subr.mxu0 %v152
  %595 = vmatpush1.msra.mxu0 %v149
  %596 = vmatprep.subr.mxu0 0.0
  %597 = vmatpush1.msra.mxu0 0.0
  %598 = vmatprep.subr.mxu0 0.0
  %599 = vmatpush1.msra.mxu0 0.0
  %600 = vmatprep.subr.mxu0 0.0
  %601 = vmatpush1.msra.mxu0 0.0
  %602 = vmatprep.subr.mxu0 0.0
  %603 = vmatpush1.msra.mxu0 0.0
  %604 = vmatprep.subr.mxu0 0.0
  %605 = vmatpush1.msra.mxu0 0.0
  %606 = vmatprep.subr.mxu0 0.0
  %607 = vmatpush1.msra.mxu0 0.0
  %608 = vmatprep.subr.mxu0 0.0
  %609 = vmatpush1.msra.mxu0 0.0
  %610 = vmatprep.subr.mxu0 0.0
  %611 = vmatpush1.msra.mxu0 0.0
  %612 = vmatprep.subr.mxu0 0.0
  %613 = vmatpush1.msra.mxu0 0.0
  %614 = vmatprep.subr.mxu0 0.0
  %615 = vmatpush1.msra.mxu0 0.0
  %616 = vmatprep.subr.mxu0 0.0
  %617 = vmatpush1.msra.mxu0 0.0
  %618 = vmatprep.subr.mxu0 0.0
  %619 = vmatpush1.msra.mxu0 0.0
  %620 = vmatprep.subr.mxu0 0.0
  %621 = vmatpush1.msra.mxu0 0.0
  %622 = vmatprep.subr.mxu0 0.0
  %623 = vmatpush1.msra.mxu0 0.0
  %624 = vmatprep.subr.mxu0 0.0
  %625 = vmatpush1.msra.mxu0 0.0
  %626 = vmatprep.subr.mxu0 0.0
  %627 = vmatpush1.msra.mxu0 0.0
  %628 = vmatprep.subr.mxu0 0.0
  %629 = vmatpush1.msra.mxu0 0.0
  %630 = vmatprep.subr.mxu0 0.0
  %631 = vmatpush1.msra.mxu0 0.0
  %632 = vmatprep.subr.mxu0 0.0
  %633 = vmatpush1.msra.mxu0 0.0
  %634 = vmatprep.subr.mxu0 0.0
  %635 = vmatpush1.msra.mxu0 0.0
  %636 = vmatprep.subr.mxu0 0.0
  %637 = vmatpush1.msra.mxu0 0.0
  %638 = vmatprep.subr.mxu0 0.0
  %639 = vmatpush1.msra.mxu0 0.0
  %640 = vmatprep.subr.mxu0 0.0
  %641 = vmatpush1.msra.mxu0 0.0
  %642 = vmatprep.subr.mxu0 0.0
  %643 = vmatpush1.msra.mxu0 0.0
  %644 = vmatprep.subr.mxu0 0.0
  %645 = vmatpush1.msra.mxu0 0.0
  %646 = vmatprep.subr.mxu0 0.0
  %647 = vmatpush1.msra.mxu0 0.0
  %648 = vmatprep.subr.mxu0 0.0
  %649 = vmatpush1.msra.mxu0 0.0
  %650 = vmatprep.mubr.f32.mxu0 0.0
  %651 = vmatmul.mubr.f32.gmra.mrb[0].mxu0 %v109
  %v652 = vpop.f32.mrb[0].mxu0
  %v653 = vadd.f32 %v105, %v652
  %v654 = vpop.f32.mrb[0].mxu0
  %v655 = vadd.f32 %v105, %v654
  %656 = vdwg.mxu0
  %657 = vmatprep.subr.mxu0 %v36
  %658 = vmatpush1.msra.mxu0 %v35
  %659 = vmatprep.subr.mxu0 %v52
  %660 = vmatpush1.msra.mxu0 %v51
  %661 = vmatprep.subr.mxu0 %v68
  %662 = vmatpush1.msra.mxu0 %v67
  %663 = vmatprep.subr.mxu0 %v84
  %664 = vmatpush1.msra.mxu0 %v83
  %665 = vmatprep.subr.mxu0 %v158
  %666 = vmatpush1.msra.mxu0 %v155
  %667 = vmatprep.subr.mxu0 0.0
  %668 = vmatpush1.msra.mxu0 0.0
  %669 = vmatprep.subr.mxu0 0.0
  %670 = vmatpush1.msra.mxu0 0.0
  %671 = vmatprep.subr.mxu0 0.0
  %672 = vmatpush1.msra.mxu0 0.0
  %673 = vmatprep.subr.mxu0 0.0
  %674 = vmatpush1.msra.mxu0 0.0
  %675 = vmatprep.subr.mxu0 0.0
  %676 = vmatpush1.msra.mxu0 0.0
  %677 = vmatprep.subr.mxu0 0.0
  %678 = vmatpush1.msra.mxu0 0.0
  %679 = vmatprep.subr.mxu0 0.0
  %680 = vmatpush1.msra.mxu0 0.0
  %681 = vmatprep.subr.mxu0 0.0
  %682 = vmatpush1.msra.mxu0 0.0
  %683 = vmatprep.subr.mxu0 0.0
  %684 = vmatpush1.msra.mxu0 0.0
  %685 = vmatprep.subr.mxu0 0.0
  %686 = vmatpush1.msra.mxu0 0.0
  %687 = vmatprep.subr.mxu0 0.0
  %688 = vmatpush1.msra.mxu0 0.0
  %689 = vmatprep.subr.mxu0 0.0
  %690 = vmatpush1.msra.mxu0 0.0
  %691 = vmatprep.subr.mxu0 0.0
  %692 = vmatpush1.msra.mxu0 0.0
  %693 = vmatprep.subr.mxu0 0.0
  %694 = vmatpush1.msra.mxu0 0.0
  %695 = vmatprep.subr.mxu0 0.0
  %696 = vmatpush1.msra.mxu0 0.0
  %697 = vmatprep.subr.mxu0 0.0
  %698 = vmatpush1.msra.mxu0 0.0
  %699 = vmatprep.subr.mxu0 0.0
  %700 = vmatpush1.msra.mxu0 0.0
  %701 = vmatprep.subr.mxu0 0.0
  %702 = vmatpush1.msra.mxu0 0.0
  %703 = vmatprep.subr.mxu0 0.0
  %704 = vmatpush1.msra.mxu0 0.0
  %705 = vmatprep.subr.mxu0 0.0
  %706 = vmatpush1.msra.mxu0 0.0
  %707 = vmatprep.subr.mxu0 0.0
  %708 = vmatpush1.msra.mxu0 0.0
  %709 = vmatprep.subr.mxu0 0.0
  %710 = vmatpush1.msra.mxu0 0.0
  %711 = vmatprep.subr.mxu0 0.0
  %712 = vmatpush1.msra.mxu0 0.0
  %713 = vmatprep.subr.mxu0 0.0
  %714 = vmatpush1.msra.mxu0 0.0
  %715 = vmatprep.subr.mxu0 0.0
  %716 = vmatpush1.msra.mxu0 0.0
  %717 = vmatprep.subr.mxu0 0.0
  %718 = vmatpush1.msra.mxu0 0.0
  %719 = vmatprep.subr.mxu0 0.0
  %720 = vmatpush1.msra.mxu0 0.0
  %721 = vmatprep.mubr.f32.mxu0 0.0
  %722 = vmatmul.mubr.f32.gmra.mrb[0].mxu0 %v109
  %v723 = vpop.f32.mrb[0].mxu0
  %v724 = vadd.f32 %v105, %v723
  %v725 = vpop.f32.mrb[0].mxu0
  %v726 = vadd.f32 %v105, %v725
  %727 = vdwg.mxu0
  %v728 = vmax.f32 %v227, 0.0
  %v729 = vmax.f32 %v229, 0.0
  %v730 = vmax.f32 %v298, 0.0
  %v731 = vmax.f32 %v300, 0.0
  %v732 = vmax.f32 %v369, 0.0
  %v733 = vmax.f32 %v371, 0.0
  %v734 = vmax.f32 %v440, 0.0
  %v735 = vmax.f32 %v442, 0.0
  %v736 = vmax.f32 %v511, 0.0
  %v737 = vmax.f32 %v513, 0.0
  %v738 = vmax.f32 %v582, 0.0
  %v739 = vmax.f32 %v584, 0.0
  %v740 = vmax.f32 %v653, 0.0
  %v741 = vmax.f32 %v655, 0.0
  %v742 = vmax.f32 %v724, 0.0
  %v743 = vmax.f32 %v726, 0.0
  %v744 = vadd.f32 %v728, %v729
  %745 = vadd.xlane.f32.xlu0 %v744
  %v746 = vpop.xlane.xlu0 %745
  %v747 = vadd.f32 %v730, %v731
  %748 = vadd.xlane.f32.xlu0 %v747
  %v749 = vpop.xlane.xlu0 %748
  %v750 = vadd.f32 %v732, %v733
  %751 = vadd.xlane.f32.xlu0 %v750
  %v752 = vpop.xlane.xlu0 %751
  %v753 = vadd.f32 %v734, %v735
  %754 = vadd.xlane.f32.xlu0 %v753
  %v755 = vpop.xlane.xlu0 %754
  %v756 = vadd.f32 %v736, %v737
  %757 = vadd.xlane.f32.xlu0 %v756
  %v758 = vpop.xlane.xlu0 %757
  %v759 = vadd.f32 %v738, %v739
  %760 = vadd.xlane.f32.xlu0 %v759
  %v761 = vpop.xlane.xlu0 %760
  %v762 = vadd.f32 %v740, %v741
  %763 = vadd.xlane.f32.xlu0 %v762
  %v764 = vpop.xlane.xlu0 %763
  %v765 = vadd.f32 %v742, %v743
  %766 = vadd.xlane.f32.xlu0 %v765
  %v767 = vpop.xlane.xlu0 %766
  %vm768 = vcmask 7168
  %v769 = vsel %vm768, %v746, %v749
  %vm770 = vcmask 15360
  %v771 = vsel %vm770, %v769, %v752
  %vm772 = vcmask 23552
  %v773 = vsel %vm772, %v771, %v755
  %vm774 = vcmask 31744
  %v775 = vsel %vm774, %v773, %v758
  %vm776 = vcmask 39936
  %v777 = vsel %vm776, %v775, %v761
  %vm778 = vcmask 48128
  %v779 = vsel %vm778, %v777, %v764
  %vm780 = vcmask 56320
  %v781 = vsel %vm780, %v779, %v767
  %v782 = vmul.f32 %v781, 0.00390625
  %v783 = vld [vmem:[%s3] sm:$0xff]
  %v784 = vld [vmem:[%s4] sm:$0x1]
  %v786 = vlaneseq
  %v787 = vshrl.u32 %v786, 7
  %v788 = vsub.s32 0, %v787
  %v789 = vrot.slane %v784, %v788
  %791 = vxpose.xlu0.b32.start [1/16] %v782, 128
  %792 = vxpose.xlu0.b32.cont [2/16] 0.0, 128
  %793 = vxpose.xlu0.b32.cont [3/16] 0.0, 128
  %794 = vxpose.xlu0.b32.cont [4/16] 0.0, 128
  %795 = vxpose.xlu0.b32.cont [5/16] 0.0, 128
  %796 = vxpose.xlu0.b32.cont [6/16] 0.0, 128
  %797 = vxpose.xlu0.b32.cont [7/16] 0.0, 128
  %798 = vxpose.xlu0.b32.cont [8/16] 0.0, 128
  %799 = vxpose.xlu0.b32.cont [9/16] 0.0, 128
  %800 = vxpose.xlu0.b32.cont [10/16] 0.0, 128
  %801 = vxpose.xlu0.b32.cont [11/16] 0.0, 128
  %802 = vxpose.xlu0.b32.cont [12/16] 0.0, 128
  %803 = vxpose.xlu0.b32.cont [13/16] 0.0, 128
  %804 = vxpose.xlu0.b32.cont [14/16] 0.0, 128
  %805 = vxpose.xlu0.b32.cont [15/16] 0.0, 128
  %806 = vxpose.xlu0.b32.end [16/16] 0.0, 128
  %v807 = vpop.trf.xlu0
  %v808 = vpop.trf.xlu0
  %v809 = vpop.trf.xlu0
  %v810 = vpop.trf.xlu0
  %v811 = vpop.trf.xlu0
  %v812 = vpop.trf.xlu0
  %v813 = vpop.trf.xlu0
  %v814 = vpop.trf.xlu0
  %v815 = vpop.trf.xlu0
  %v816 = vpop.trf.xlu0
  %v817 = vpop.trf.xlu0
  %v818 = vpop.trf.xlu0
  %v819 = vpop.trf.xlu0
  %v820 = vpop.trf.xlu0
  %v821 = vpop.trf.xlu0
  %v822 = vpop.trf.xlu0
  %vm823 = vcmask 64512
  %v825 = vsel %vm823, %v807, 0
  %827 = vmatprep.subr.mxu0 0.0
  %828 = vmatpush1.msra.mxu0 %v783
  %829 = vmatprep.subr.mxu0 0.0
  %830 = vmatpush1.msra.mxu0 0.0
  %831 = vmatprep.subr.mxu0 0.0
  %832 = vmatpush1.msra.mxu0 0.0
  %833 = vmatprep.subr.mxu0 0.0
  %834 = vmatpush1.msra.mxu0 0.0
  %835 = vmatprep.subr.mxu0 0.0
  %836 = vmatpush1.msra.mxu0 0.0
  %837 = vmatprep.subr.mxu0 0.0
  %838 = vmatpush1.msra.mxu0 0.0
  %839 = vmatprep.subr.mxu0 0.0
  %840 = vmatpush1.msra.mxu0 0.0
  %841 = vmatprep.subr.mxu0 0.0
  %842 = vmatpush1.msra.mxu0 0.0
  %843 = vmatprep.subr.mxu0 0.0
  %844 = vmatpush1.msra.mxu0 0.0
  %845 = vmatprep.subr.mxu0 0.0
  %846 = vmatpush1.msra.mxu0 0.0
  %847 = vmatprep.subr.mxu0 0.0
  %848 = vmatpush1.msra.mxu0 0.0
  %849 = vmatprep.subr.mxu0 0.0
  %850 = vmatpush1.msra.mxu0 0.0
  %851 = vmatprep.subr.mxu0 0.0
  %852 = vmatpush1.msra.mxu0 0.0
  %853 = vmatprep.subr.mxu0 0.0
  %854 = vmatpush1.msra.mxu0 0.0
  %855 = vmatprep.subr.mxu0 0.0
  %856 = vmatpush1.msra.mxu0 0.0
  %857 = vmatprep.subr.mxu0 0.0
  %858 = vmatpush1.msra.mxu0 0.0
  %859 = vmatprep.subr.mxu0 0.0
  %860 = vmatpush1.msra.mxu0 0.0
  %861 = vmatprep.subr.mxu0 0.0
  %862 = vmatpush1.msra.mxu0 0.0
  %863 = vmatprep.subr.mxu0 0.0
  %864 = vmatpush1.msra.mxu0 0.0
  %865 = vmatprep.subr.mxu0 0.0
  %866 = vmatpush1.msra.mxu0 0.0
  %867 = vmatprep.subr.mxu0 0.0
  %868 = vmatpush1.msra.mxu0 0.0
  %869 = vmatprep.subr.mxu0 0.0
  %870 = vmatpush1.msra.mxu0 0.0
  %871 = vmatprep.subr.mxu0 0.0
  %872 = vmatpush1.msra.mxu0 0.0
  %873 = vmatprep.subr.mxu0 0.0
  %874 = vmatpush1.msra.mxu0 0.0
  %875 = vmatprep.subr.mxu0 0.0
  %876 = vmatpush1.msra.mxu0 0.0
  %877 = vmatprep.subr.mxu0 0.0
  %878 = vmatpush1.msra.mxu0 0.0
  %879 = vmatprep.subr.mxu0 0.0
  %880 = vmatpush1.msra.mxu0 0.0
  %881 = vmatprep.subr.mxu0 0.0
  %882 = vmatpush1.msra.mxu0 0.0
  %883 = vmatprep.subr.mxu0 0.0
  %884 = vmatpush1.msra.mxu0 0.0
  %885 = vmatprep.subr.mxu0 0.0
  %886 = vmatpush1.msra.mxu0 0.0
  %887 = vmatprep.subr.mxu0 0.0
  %888 = vmatpush1.msra.mxu0 0.0
  %889 = vmatprep.subr.mxu0 0.0
  %890 = vmatpush1.msra.mxu0 0.0
  %891 = vmatprep.mubr.f32.mxu0 0.0
  %892 = vmatmul.mubr.f32.gmra.mrb[0].mxu0 %v825
  %v893 = vpop.f32.mrb[0].mxu0
  %v894 = vadd.f32 %v789, %v893
  %v895 = vpop.f32.mrb[0].mxu0
  %896 = vdwg.mxu0
  %897 = vst [vmem:[%s5] sm:$0xff] %v894
  // Predicated region
  $region22: #{wrapped_model_forward.1} parent=0 // pred_check
    _
  $region23: #{wrapped_model_forward.1} parent=0 // pred_check_branch
    %899 = sbr.rel (0) target = $region25
  $region24: #{wrapped_model_forward.1} parent=0 // pred_region
    _
  $region25: #{wrapped_model_forward.1} parent=0 // pred_fallthru
    _
  // Predicated region
  $region26: #{wrapped_model_forward.1} parent=0 // pred_check
    _
  $region27: #{wrapped_model_forward.1} parent=0 // pred_check_branch
    %901 = sbr.rel (0) target = $region29
  $region28: #{wrapped_model_forward.1} parent=0 // pred_region
    _
  $region29: #{wrapped_model_forward.1} parent=0 // pred_fallthru
    _

</llo_original>
